<compile_context>
chip_gen: v5e
topology: v5e:2x2
jax: 0.10.0
libtpu: 0.0.40
codegen_flags: <defaults>
</compile_context>

<pallas_src>
import jax
import jax.numpy as jnp
from jax import lax
from jax.experimental import pallas as pl
from jax.experimental.pallas import tpu as pltpu

LN_EPS = 1e-12          # BERT default layer_norm_eps
_INV_SQRT2 = 0.7071067811865476


def _round_up(n, m):
    return ((n + m - 1) // m) * m


# ---------------------------------------------------------------------------
# Fused kernel: transform (once per M tile) + decoder matmul over vocab tiles.
# ---------------------------------------------------------------------------
def _mlm_fused_kernel(x_ref, w1_ref, b1_ref, g_ref, beta_ref, wd_ref, bias_ref,
                      o_ref, h_ref):
    j = pl.program_id(1)

    @pl.when(j == 0)
    def _():
        # dense (bf16 MXU, f32 acc) -> exact erf GELU (f32) -> LayerNorm (f32)
        h = jnp.dot(x_ref[...], w1_ref[...], preferred_element_type=jnp.float32)
        h = h + b1_ref[...]
        h = 0.5 * h * (1.0 + lax.erf(h * _INV_SQRT2))
        mean = jnp.mean(h, axis=-1, keepdims=True)
        var = jnp.mean(jnp.square(h - mean), axis=-1, keepdims=True)
        hn = (h - mean) * lax.rsqrt(var + LN_EPS)
        h_ref[...] = (hn * g_ref[...] + beta_ref[...]).astype(h_ref.dtype)

    # Decoder tile: logits = h_tile @ W[:, j*tv:(j+1)*tv] + bias tile.
    acc = jnp.dot(h_ref[...], wd_ref[...], preferred_element_type=jnp.float32)
    o_ref[...] = (acc + bias_ref[...]).astype(o_ref.dtype)


# ---------------------------------------------------------------------------
# One-time parameter preparation (hoisted out of the per-call path).
# ---------------------------------------------------------------------------
def prepare_params(params, *, tv=2048):
    """Cast weights to bf16 and pad vocab once. Reuse the result every call."""
    H = params["dense_w"].shape[0]
    V = params["dec_w"].shape[1]
    tv = min(tv, _round_up(V, 128))
    v_pad = _round_up(V, tv)

    wd = params["dec_w"].astype(jnp.bfloat16)                  # [H, V] (in, out)
    dec_bias = params["dec_bias"].reshape(1, V).astype(jnp.float32)
    if v_pad != V:
        wd = jnp.pad(wd, ((0, 0), (0, v_pad - V)))
        dec_bias = jnp.pad(dec_bias, ((0, 0), (0, v_pad - V)))

    return {
        "w1": params["dense_w"].astype(jnp.bfloat16),           # [H, H] (in, out)
        "b1": params["dense_b"].reshape(1, H).astype(jnp.float32),
        "gamma": params["ln_gamma"].reshape(1, H).astype(jnp.float32),
        "beta": params["ln_beta"].reshape(1, H).astype(jnp.float32),
        "wd": wd,
        "dec_bias": dec_bias,
        "hidden": int(H),
        "vocab": int(V),
        "v_pad": int(v_pad),
        "tv": int(tv),
    }


def _vmem_bytes(tm, tv, H, out_itemsize):
    # Double-buffered pipeline buffers + resident h scratch (+ pinned weights).
    buf = 2 * (tm * H * 2          # x tile (bf16)
               + H * H * 2         # w1 (pinned, still 2 bufs)
               + 3 * H * 4         # b1 / gamma / beta (f32)
               + H * tv * 2        # wd tile (bf16)
               + tv * 4            # dec_bias tile (f32)
               + tm * tv * out_itemsize)   # logits tile
    buf += tm * H * 2              # h scratch (bf16)
    return buf


# ---------------------------------------------------------------------------
# Forward wrapper.
# ---------------------------------------------------------------------------
def mlm_head(x, prepared, *, tm=1024, out_dtype=jnp.bfloat16):
    """x: [B, S, H] -> logits [B, S, V] in `out_dtype` (bf16 by default)."""
    B, S, H = x.shape
    assert H == prepared["hidden"]
    M = B * S
    V = prepared["vocab"]
    v_pad = prepared["v_pad"]
    tv = prepared["tv"]

    # Per-call activation prep (cheap vs. the vocab-sized streams).
    x2 = x.reshape(M, H).astype(jnp.bfloat16)
    tm = min(tm, _round_up(M, 8))
    m_pad = _round_up(M, tm)
    if m_pad != M:
        x2 = jnp.pad(x2, ((0, m_pad - M), (0, 0)))

    out_itemsize = jnp.dtype(out_dtype).itemsize
    vmem_limit = int(min(max(_vmem_bytes(tm, tv, H, out_itemsize) + (4 << 20),
                             24 << 20),
                         64 << 20))   # v7x has 64 MiB/TC physical VMEM

    logits = pl.pallas_call(
        _mlm_fused_kernel,
        out_shape=jax.ShapeDtypeStruct((m_pad, v_pad), out_dtype),
        grid_spec=pltpu.PrefetchScalarGridSpec(
            num_scalar_prefetch=0,
            grid=(m_pad // tm, v_pad // tv),      # vocab axis innermost
            in_specs=[
                pl.BlockSpec((tm, H), lambda i, j: (i, 0)),   # x tile (fetched once per i)
                pl.BlockSpec((H, H), lambda i, j: (0, 0)),    # w1 (VMEM-resident)
                pl.BlockSpec((1, H), lambda i, j: (0, 0)),    # b1
                pl.BlockSpec((1, H), lambda i, j: (0, 0)),    # gamma
                pl.BlockSpec((1, H), lambda i, j: (0, 0)),    # beta
                pl.BlockSpec((H, tv), lambda i, j: (0, j)),   # decoder weight tile
                pl.BlockSpec((1, tv), lambda i, j: (0, j)),   # decoder bias tile
            ],
            out_specs=pl.BlockSpec((tm, tv), lambda i, j: (i, j)),
            scratch_shapes=[pltpu.VMEM((tm, H), jnp.bfloat16)],  # resident h tile
        ),
        compiler_params=pltpu.CompilerParams(
            dimension_semantics=("parallel", "arbitrary"),
            vmem_limit_bytes=vmem_limit),
    )(x2, prepared["w1"], prepared["b1"], prepared["gamma"], prepared["beta"],
      prepared["wd"], prepared["dec_bias"])

    return logits[:M, :V].reshape(B, S, V)


# ---------------------------------------------------------------------------
# Parameter init + pure-JAX reference (mirrors the kernel's precision choices).
# ---------------------------------------------------------------------------
def init_params(key, hidden, vocab):
    k1, k2 = jax.random.split(key, 2)
    return {
        "dense_w": 0.02 * jax.random.normal(k1, (hidden, hidden), jnp.float32),
        "dense_b": jnp.zeros((hidden,), jnp.float32),
        "ln_gamma": jnp.ones((hidden,), jnp.float32),
        "ln_beta": jnp.zeros((hidden,), jnp.float32),
        "dec_w": 0.02 * jax.random.normal(k2, (hidden, vocab), jnp.float32),
        "dec_bias": jnp.zeros((vocab,), jnp.float32),
    }


def _reference(x, params):
    # Mirrors the kernel's bf16-operand / f32-accumulation choices so the
    # comparison isolates kernel correctness from quantization error.
    B, S, H = x.shape
    xb = x.reshape(-1, H).astype(jnp.bfloat16)
    w1 = params["dense_w"].astype(jnp.bfloat16)
    h = jnp.dot(xb, w1, preferred_element_type=jnp.float32) + params["dense_b"]
    h = 0.5 * h * (1.0 + lax.erf(h * _INV_SQRT2))
    mean = h.mean(-1, keepdims=True)
    var = ((h - mean) ** 2).mean(-1, keepdims=True)
    h = (h - mean) / jnp.sqrt(var + LN_EPS)
    h = h * params["ln_gamma"] + params["ln_beta"]
    hb = h.astype(jnp.bfloat16)
    wd = params["dec_w"].astype(jnp.bfloat16)
    logits = jnp.dot(hb, wd, preferred_element_type=jnp.float32) + params["dec_bias"]
    return logits.reshape(B, S, -1)


if __name__ == "__main__":
    B, S, H, V = 2, 8, 32, 256
    key = jax.random.PRNGKey(0)
    kx, kp = jax.random.split(key)
    x = jax.random.normal(kx, (B, S, H), jnp.float32)
    params = init_params(kp, H, V)

    prepared = prepare_params(params)        # one-time weight prep
    out = mlm_head(x, prepared)              # bf16 logits by default
    out = jax.block_until_ready(out)

    ref = _reference(x, params)
    assert out.shape == (B, S, V)
    err = float(jnp.max(jnp.abs(out.astype(jnp.float32) - ref)))
    assert jnp.allclose(out.astype(jnp.float32), ref, atol=2e-2, rtol=2e-2), err
    print("KERNEL_OK")
</pallas_src>

<mosaic_0001>
module attributes {stable_mosaic.version = 11 : i64} {
  func.func @_mlm_fused_kernel(%arg0: i32, %arg1: i32, %arg2: memref<16x32xbf16, #tpu.memory_space<vmem>>, %arg3: memref<32x32xbf16, #tpu.memory_space<vmem>>, %arg4: memref<1x32xf32, #tpu.memory_space<vmem>>, %arg5: memref<1x32xf32, #tpu.memory_space<vmem>>, %arg6: memref<1x32xf32, #tpu.memory_space<vmem>>, %arg7: memref<32x256xbf16, #tpu.memory_space<vmem>>, %arg8: memref<1x256xf32, #tpu.memory_space<vmem>>, %arg9: memref<16x256xbf16, #tpu.memory_space<vmem>>, %arg10: memref<16x32xbf16, #tpu.memory_space<vmem>>) attributes {dimension_semantics = [#tpu.dimension_semantics<parallel>, #tpu.dimension_semantics<arbitrary>], iteration_bounds = array<i64: 1, 1>, scalar_prefetch = 0 : i64, scratch_operands = 1 : i64, tpu.core_type = #tpu.core_type<tc>, window_params = [{transform_indices = @transform_0, window_bounds = array<i64: 16, 32>}, {pipeline_mode = #tpu.pipeline_mode<synchronous>, transform_indices = @transform_1, window_bounds = array<i64: 32, 32>}, {pipeline_mode = #tpu.pipeline_mode<synchronous>, transform_indices = @transform_2, window_bounds = array<i64: 1, 32>}, {pipeline_mode = #tpu.pipeline_mode<synchronous>, transform_indices = @transform_3, window_bounds = array<i64: 1, 32>}, {pipeline_mode = #tpu.pipeline_mode<synchronous>, transform_indices = @transform_4, window_bounds = array<i64: 1, 32>}, {transform_indices = @transform_5, window_bounds = array<i64: 32, 256>}, {transform_indices = @transform_6, window_bounds = array<i64: 1, 256>}, {transform_indices = @transform_7, window_bounds = array<i64: 16, 256>}]} {
    %c0_i32 = arith.constant 0 : i32
    %0 = arith.cmpi eq, %arg1, %c0_i32 : i32
    %1 = arith.extui %0 : i1 to i32
    %c0_i32_0 = arith.constant 0 : i32
    %2 = arith.cmpi ne, %1, %c0_i32_0 : i32
    scf.if %2 {
      %c0_8 = arith.constant 0 : index
      %c0_9 = arith.constant 0 : index
      %11 = vector.load %arg2[%c0_8, %c0_9] : memref<16x32xbf16, #tpu.memory_space<vmem>>, vector<16x32xbf16>
      %c0_10 = arith.constant 0 : index
      %c0_11 = arith.constant 0 : index
      %12 = vector.load %arg3[%c0_10, %c0_11] : memref<32x32xbf16, #tpu.memory_space<vmem>>, vector<32x32xbf16>
      %cst_12 = arith.constant dense<0.000000e+00> : vector<16x32xf32>
      %13 = tpu.matmul %11, %12, %cst_12 {dimension_numbers = #tpu.dot_dimension_numbers<[1], [0], [0], [1], [0, 0, 1, 1], [], []>} : vector<16x32xbf16>, vector<32x32xbf16>, vector<16x32xf32> -> vector<16x32xf32>
      %c0_13 = arith.constant 0 : index
      %c0_14 = arith.constant 0 : index
      %14 = vector.load %arg4[%c0_13, %c0_14] : memref<1x32xf32, #tpu.memory_space<vmem>>, vector<1x32xf32>
      %15 = vector.broadcast %14 : vector<1x32xf32> to vector<16x32xf32>
      %16 = arith.addf %13, %15 : vector<16x32xf32>
      %cst_15 = arith.constant 5.000000e-01 : f32
      %17 = vector.broadcast %cst_15 : f32 to vector<16x32xf32>
      %18 = arith.mulf %17, %16 : vector<16x32xf32>
      %cst_16 = arith.constant 0.707106769 : f32
      %19 = vector.broadcast %cst_16 : f32 to vector<16x32xf32>
      %20 = arith.mulf %16, %19 : vector<16x32xf32>
      %21 = math.erf %20 : vector<16x32xf32>
      %cst_17 = arith.constant 1.000000e+00 : f32
      %22 = vector.broadcast %cst_17 : f32 to vector<16x32xf32>
      %23 = arith.addf %22, %21 : vector<16x32xf32>
      %24 = arith.mulf %18, %23 : vector<16x32xf32>
      %cst_18 = arith.constant dense<0.000000e+00> : vector<16xf32>
      %25 = vector.multi_reduction <add>, %24, %cst_18 [1] : vector<16x32xf32> to vector<16xf32>
      %26 = vector.shape_cast %25 : vector<16xf32> to vector<16x1xf32>
      %cst_19 = arith.constant 3.200000e+01 : f32
      %27 = vector.broadcast %cst_19 : f32 to vector<16x1xf32>
      %28 = arith.divf %26, %27 : vector<16x1xf32>
      %29 = vector.broadcast %28 : vector<16x1xf32> to vector<16x32xf32>
      %30 = arith.subf %24, %29 : vector<16x32xf32>
      %31 = arith.mulf %30, %30 : vector<16x32xf32>
      %cst_20 = arith.constant dense<0.000000e+00> : vector<16xf32>
      %32 = vector.multi_reduction <add>, %31, %cst_20 [1] : vector<16x32xf32> to vector<16xf32>
      %33 = vector.shape_cast %32 : vector<16xf32> to vector<16x1xf32>
      %cst_21 = arith.constant 3.200000e+01 : f32
      %34 = vector.broadcast %cst_21 : f32 to vector<16x1xf32>
      %35 = arith.divf %33, %34 : vector<16x1xf32>
      %36 = vector.broadcast %28 : vector<16x1xf32> to vector<16x32xf32>
      %37 = arith.subf %24, %36 : vector<16x32xf32>
      %cst_22 = arith.constant 9.99999996E-13 : f32
      %38 = vector.broadcast %cst_22 : f32 to vector<16x1xf32>
      %39 = arith.addf %35, %38 : vector<16x1xf32>
      %40 = math.rsqrt %39 : vector<16x1xf32>
      %41 = vector.broadcast %40 : vector<16x1xf32> to vector<16x32xf32>
      %42 = arith.mulf %37, %41 : vector<16x32xf32>
      %c0_23 = arith.constant 0 : index
      %c0_24 = arith.constant 0 : index
      %43 = vector.load %arg5[%c0_23, %c0_24] : memref<1x32xf32, #tpu.memory_space<vmem>>, vector<1x32xf32>
      %44 = vector.broadcast %43 : vector<1x32xf32> to vector<16x32xf32>
      %45 = arith.mulf %42, %44 : vector<16x32xf32>
      %c0_25 = arith.constant 0 : index
      %c0_26 = arith.constant 0 : index
      %46 = vector.load %arg6[%c0_25, %c0_26] : memref<1x32xf32, #tpu.memory_space<vmem>>, vector<1x32xf32>
      %47 = vector.broadcast %46 : vector<1x32xf32> to vector<16x32xf32>
      %48 = arith.addf %45, %47 : vector<16x32xf32>
      %49 = arith.truncf %48 : vector<16x32xf32> to vector<16x32xbf16>
      %c0_27 = arith.constant 0 : index
      %c0_28 = arith.constant 0 : index
      %50 = vector.load %arg10[%c0_27, %c0_28] : memref<16x32xbf16, #tpu.memory_space<vmem>>, vector<16x32xbf16>
      tpu.vector_store %arg10[%c0_27, %c0_28], %49 {strides = array<i32>} : memref<16x32xbf16, #tpu.memory_space<vmem>>, vector<16x32xbf16>,
    } else {
    }
    %c0 = arith.constant 0 : index
    %c0_1 = arith.constant 0 : index
    %3 = vector.load %arg10[%c0, %c0_1] : memref<16x32xbf16, #tpu.memory_space<vmem>>, vector<16x32xbf16>
    %c0_2 = arith.constant 0 : index
    %c0_3 = arith.constant 0 : index
    %4 = vector.load %arg7[%c0_2, %c0_3] : memref<32x256xbf16, #tpu.memory_space<vmem>>, vector<32x256xbf16>
    %cst = arith.constant dense<0.000000e+00> : vector<16x256xf32>
    %5 = tpu.matmul %3, %4, %cst {dimension_numbers = #tpu.dot_dimension_numbers<[1], [0], [0], [1], [0, 0, 1, 1], [], []>} : vector<16x32xbf16>, vector<32x256xbf16>, vector<16x256xf32> -> vector<16x256xf32>
    %c0_4 = arith.constant 0 : index
    %c0_5 = arith.constant 0 : index
    %6 = vector.load %arg8[%c0_4, %c0_5] : memref<1x256xf32, #tpu.memory_space<vmem>>, vector<1x256xf32>
    %7 = vector.broadcast %6 : vector<1x256xf32> to vector<16x256xf32>
    %8 = arith.addf %5, %7 : vector<16x256xf32>
    %9 = arith.truncf %8 : vector<16x256xf32> to vector<16x256xbf16>
    %c0_6 = arith.constant 0 : index
    %c0_7 = arith.constant 0 : index
    %10 = vector.load %arg9[%c0_6, %c0_7] : memref<16x256xbf16, #tpu.memory_space<vmem>>, vector<16x256xbf16>
    tpu.vector_store %arg9[%c0_6, %c0_7], %9 {strides = array<i32>} : memref<16x256xbf16, #tpu.memory_space<vmem>>, vector<16x256xbf16>,
    return
  }
  func.func @transform_0(%arg0: i32, %arg1: i32) -> (i32, i32) {
    %c0_i32 = arith.constant 0 : i32
    %c0_i32_0 = arith.constant 0 : i32
    return %arg0, %c0_i32 : i32, i32
  }
  func.func @transform_1(%arg0: i32, %arg1: i32) -> (i32, i32) {
    %c0_i32 = arith.constant 0 : i32
    %c0_i32_0 = arith.constant 0 : i32
    %c0_i32_1 = arith.constant 0 : i32
    return %c0_i32, %c0_i32_0 : i32, i32
  }
  func.func @transform_2(%arg0: i32, %arg1: i32) -> (i32, i32) {
    %c0_i32 = arith.constant 0 : i32
    %c0_i32_0 = arith.constant 0 : i32
    %c0_i32_1 = arith.constant 0 : i32
    return %c0_i32, %c0_i32_0 : i32, i32
  }
  func.func @transform_3(%arg0: i32, %arg1: i32) -> (i32, i32) {
    %c0_i32 = arith.constant 0 : i32
    %c0_i32_0 = arith.constant 0 : i32
    %c0_i32_1 = arith.constant 0 : i32
    return %c0_i32, %c0_i32_0 : i32, i32
  }
  func.func @transform_4(%arg0: i32, %arg1: i32) -> (i32, i32) {
    %c0_i32 = arith.constant 0 : i32
    %c0_i32_0 = arith.constant 0 : i32
    %c0_i32_1 = arith.constant 0 : i32
    return %c0_i32, %c0_i32_0 : i32, i32
  }
  func.func @transform_5(%arg0: i32, %arg1: i32) -> (i32, i32) {
    %c0_i32 = arith.constant 0 : i32
    %c0_i32_0 = arith.constant 0 : i32
    return %c0_i32, %arg1 : i32, i32
  }
  func.func @transform_6(%arg0: i32, %arg1: i32) -> (i32, i32) {
    %c0_i32 = arith.constant 0 : i32
    %c0_i32_0 = arith.constant 0 : i32
    return %c0_i32, %arg1 : i32, i32
  }
  func.func @transform_7(%arg0: i32, %arg1: i32) -> (i32, i32) {
    %c0_i32 = arith.constant 0 : i32
    return %arg0, %arg1 : i32, i32
  }
}

</mosaic_0001>

<llo_original>
// kernel: tpu_custom_call.1
$region0: #{tpu_custom_call.1}
  #allocation0 [shape = 'u32[]', space=smem, size = 0x4, offset = 0x4, fixed_abs, tag = 'smem constant byte address 0x4 - core index']
  #allocation1 [shape = 'u32[72,128]{1,0:T(1,128)}', space=vmem, size = 0x9000, scoped, tag = 'internal scratch']
  #allocation2 [shape = 'bf16[16,32]{1,0:T(8,128)(2,1)}', space=vmem, size = 0x1000, scoped, tag = 'scratch operand']
  %s0 = inlined_call_operand.hbm [shape: bf16[16,32], index: 0, kind: input, shape index: {}]
  %s1 = inlined_call_operand.hbm [shape: bf16[32,32], index: 1, kind: input, shape index: {}]
  %s2 = inlined_call_operand.vmem [shape: f32[1,32], index: 2, kind: input, shape index: {}]
  %s3 = inlined_call_operand.hbm [shape: f32[1,32], index: 3, kind: input, shape index: {}]
  %s4 = inlined_call_operand.hbm [shape: f32[1,32], index: 4, kind: input, shape index: {}]
  %s5 = inlined_call_operand.hbm [shape: bf16[32,256], index: 5, kind: input, shape index: {}]
  %s6 = inlined_call_operand.vmem [shape: f32[1,256], index: 6, kind: input, shape index: {}]
  %s7 = inlined_call_operand.hbm [shape: bf16[16,256], index: 7, kind: output, shape index: {}]
  %s8 = sld [smem:[#allocation0]]
  $region62: #{tpu_custom_call.1} parent=0
    _
  %s10 = ssub.s32 1, %s8
  %s11 = scalar_select 0, %s10, %s8
  $region1: #{tpu_custom_call.1} parent=0
    #allocation3 [shape = 'u8[4096]{0}', space=vmem, size = 0x1000, scoped, tag = 'input window, operand 0, single buffered']
    #allocation4 [shape = 's32[1]{0}', space=sflag, size = 0x4, scoped, tag = 'scoped memory for tpu_custom_call.1']
    #allocation5 [shape = 's32[1]{0}', space=sflag, size = 0x4, scoped, tag = 'scoped memory for tpu_custom_call.1']
    #allocation6 [shape = 'u8[8192]{0}', space=vmem, size = 0x2000, scoped, tag = 'input window, operand 1, single buffered']
    #allocation7 [shape = 's32[1]{0}', space=sflag, size = 0x4, scoped, tag = 'scoped memory for tpu_custom_call.1']
    #allocation8 [shape = 'u8[512]{0}', space=vmem, size = 0x400, scoped, tag = 'input window, operand 3, single buffered']
    #allocation9 [shape = 'u8[512]{0}', space=vmem, size = 0x400, scoped, tag = 'input window, operand 4, single buffered']
    #allocation10 [shape = 's32[1]{0}', space=sflag, size = 0x4, scoped, tag = 'scoped memory for tpu_custom_call.1']
    #allocation11 [shape = 'u8[16384]{0}', space=vmem, size = 0x4000, scoped, tag = 'input window, operand 5, single buffered']
    #allocation12 [shape = 'u8[8192]{0}', space=vmem, size = 0x2000, scoped, tag = 'output window, operand 0, single buffered']
    %12 = vsyncpa [#allocation4], 0
    %13 = vsyncpa [#allocation7], 0
    %14 = vsyncpa [#allocation10], 0
    %15 = vsyncpa [#allocation5], 0
    // Predicated region
    $region2: #{tpu_custom_call.1} parent=1 // pred_check
      _
    $region3: #{tpu_custom_call.1} parent=1 // pred_check_branch
      %17 = sbr.rel (0) target = $region5
    $region4: #{tpu_custom_call.1} parent=1 // pred_region
      %19 = vsyncadd [#allocation4], 0
      %s20 = sshll.u32 %s0, 4
      %s21 = int_to_ptr.hbm [resolvable:$true] %s20
      %s22 = sshll.u32 [#allocation3], 4
      %s23 = int_to_ptr.vmem [resolvable:$true] %s22
      %28 = dma.hbm_to_vmem [thread:$0]  %s21, 128, %s23, [#allocation4], 64, 64, 4
    $region5: #{tpu_custom_call.1} parent=1 // pred_fallthru
      _
    // Predicated region
    $region6: #{tpu_custom_call.1} parent=1 // pred_check
      _
    $region7: #{tpu_custom_call.1} parent=1 // pred_check_branch
      %30 = sbr.rel (0) target = $region9
    $region8: #{tpu_custom_call.1} parent=1 // pred_region
      %32 = vsyncadd [#allocation7], 0
      %s33 = sshll.u32 %s1, 4
      %s34 = int_to_ptr.hbm [resolvable:$true] %s33
      %s35 = sshll.u32 [#allocation6], 4
      %s36 = int_to_ptr.vmem [resolvable:$true] %s35
      %41 = dma.hbm_to_vmem [thread:$0]  %s34, 256, %s36, [#allocation7], 64, 64, 4
    $region9: #{tpu_custom_call.1} parent=1 // pred_fallthru
      _
    // Predicated region
    $region10: #{tpu_custom_call.1} parent=1 // pred_check
      _
    $region11: #{tpu_custom_call.1} parent=1 // pred_check_branch
      %43 = sbr.rel (0) target = $region13
    $region12: #{tpu_custom_call.1} parent=1 // pred_region
      _
    $region13: #{tpu_custom_call.1} parent=1 // pred_fallthru
      _
    // Predicated region
    $region14: #{tpu_custom_call.1} parent=1 // pred_check
      _
    $region15: #{tpu_custom_call.1} parent=1 // pred_check_branch
      %45 = sbr.rel (0) target = $region17
    $region16: #{tpu_custom_call.1} parent=1 // pred_region
      %47 = vsyncadd [#allocation7], 0
      %s49 = sshll.u32 %s3, 4
      %s50 = int_to_ptr.hbm [resolvable:$true] %s49
      %s51 = sshll.u32 [#allocation8], 4
      %s52 = int_to_ptr.vmem [resolvable:$true] %s51
      %54 = dma.hbm_to_vmem [thread:$0]  %s50, 16, %s52, [#allocation7]
    $region17: #{tpu_custom_call.1} parent=1 // pred_fallthru
      _
    // Predicated region
    $region18: #{tpu_custom_call.1} parent=1 // pred_check
      _
    $region19: #{tpu_custom_call.1} parent=1 // pred_check_branch
      %56 = sbr.rel (0) target = $region21
    $region20: #{tpu_custom_call.1} parent=1 // pred_region
      %58 = vsyncadd [#allocation10], 0
      %s60 = sshll.u32 %s4, 4
      %s61 = int_to_ptr.hbm [resolvable:$true] %s60
      %s62 = sshll.u32 [#allocation9], 4
      %s63 = int_to_ptr.vmem [resolvable:$true] %s62
      %65 = dma.hbm_to_vmem [thread:$0]  %s61, 16, %s63, [#allocation10]
    $region21: #{tpu_custom_call.1} parent=1 // pred_fallthru
      _
    // Predicated region
    $region22: #{tpu_custom_call.1} parent=1 // pred_check
      _
    $region23: #{tpu_custom_call.1} parent=1 // pred_check_branch
      %67 = sbr.rel (0) target = $region25
    $region24: #{tpu_custom_call.1} parent=1 // pred_region
      %69 = vsyncadd [#allocation10], 0
      %s70 = sshll.u32 %s5, 4
      %s71 = int_to_ptr.hbm [resolvable:$true] %s70
      %s72 = sshll.u32 [#allocation11], 4
      %s73 = int_to_ptr.vmem [resolvable:$true] %s72
      %78 = dma.hbm_to_vmem [thread:$0]  %s71, 512, %s73, [#allocation10], 128, 128, 8
    $region25: #{tpu_custom_call.1} parent=1 // pred_fallthru
      _
    // Predicated region
    $region26: #{tpu_custom_call.1} parent=1 // pred_check
      _
    $region27: #{tpu_custom_call.1} parent=1 // pred_check_branch
      %80 = sbr.rel (0) target = $region29
    $region28: #{tpu_custom_call.1} parent=1 // pred_region
      _
    $region29: #{tpu_custom_call.1} parent=1 // pred_fallthru
      _
    // Predicated region
    $region30: #{tpu_custom_call.1} parent=1 // pred_check
      _
    $region31: #{tpu_custom_call.1} parent=1 // pred_check_branch
      %82 = sbr.rel (0) target = $region33
    $region32: #{tpu_custom_call.1} parent=1 // pred_region
      %84 = dma.done [#allocation4], 128
    $region33: #{tpu_custom_call.1} parent=1 // pred_fallthru
      _
    // Predicated region
    $region34: #{tpu_custom_call.1} parent=1 // pred_check
      _
    $region35: #{tpu_custom_call.1} parent=1 // pred_check_branch
      %86 = sbr.rel (0) target = $region37
    $region36: #{tpu_custom_call.1} parent=1 // pred_region
      %88 = dma.done [#allocation7], 256
    $region37: #{tpu_custom_call.1} parent=1 // pred_fallthru
      _
    // Predicated region
    $region38: #{tpu_custom_call.1} parent=1 // pred_check
      _
    $region39: #{tpu_custom_call.1} parent=1 // pred_check_branch
      %90 = sbr.rel (0) target = $region41
    $region40: #{tpu_custom_call.1} parent=1 // pred_region
      %92 = dma.done [#allocation7], 16
    $region41: #{tpu_custom_call.1} parent=1 // pred_fallthru
      _
    // Predicated region
    $region42: #{tpu_custom_call.1} parent=1 // pred_check
      _
    $region43: #{tpu_custom_call.1} parent=1 // pred_check_branch
      %94 = sbr.rel (0) target = $region45
    $region44: #{tpu_custom_call.1} parent=1 // pred_region
      %96 = dma.done [#allocation10], 16
    $region45: #{tpu_custom_call.1} parent=1 // pred_fallthru
      _
    // Predicated region
    $region46: #{tpu_custom_call.1} parent=1 // pred_check
      _
    $region47: #{tpu_custom_call.1} parent=1 // pred_check_branch
      %98 = sbr.rel (0) target = $region49
    $region48: #{tpu_custom_call.1} parent=1 // pred_region
      %100 = dma.done [#allocation10], 512
    $region49: #{tpu_custom_call.1} parent=1 // pred_fallthru
      _
    %p102 = scmp.eq.s32.totalorder 0, 0
    // Predicated region
    $region50: #{tpu_custom_call.1} parent=1 // pred_check
      %p103 = pneg %p102
    $region51: #{tpu_custom_call.1} parent=1 // pred_check_branch
      %105 = sbr.rel (%p103) target = $region53
    $region52: #{tpu_custom_call.1} parent=1 // pred_region
      %v106 = vld [vmem:[#allocation3] sm:$0xf]
      %v107 = vld [vmem:[#allocation3 + $0x4] sm:$0xf]
      %v108 = vld [vmem:[#allocation6] sm:$0xf]
      %v109 = vld [vmem:[#allocation6 + $0x4] sm:$0xf]
      %v110 = vld [vmem:[#allocation6 + $0x8] sm:$0xf]
      %v111 = vld [vmem:[#allocation6 + $0xc] sm:$0xf]
      %v112 = vld [vmem:[%s2] sm:$0x1]
      %v114 = vperm.slane %v112, 0
      %v118 = vunpack.c.l.b16 %v106
      %v119 = vunpack.c.l.b16 %v107
      %v120 = vpack.c.b16 %v119, %v118
      %v125 = vunpack.c.l.b16 %v108
      %v126 = vunpack.c.l.b16 %v109
      %v127 = vunpack.c.l.b16 %v110
      %v128 = vunpack.c.l.b16 %v111
      %v129 = vpack.c.b16 %v126, %v125
      %v130 = vpack.c.b16 %v128, %v127
      %vm133 = vcmask 261120
      %v135 = vsel %vm133, %v120, 0
      %137 = vmatpush.bf16.msra.mxu0 0
      %138 = vmatpush.bf16.msra.mxu0 0
      %139 = vmatpush.bf16.msra.mxu0 0
      %140 = vmatpush.bf16.msra.mxu0 0
      %141 = vmatpush.bf16.msra.mxu0 0
      %142 = vmatpush.bf16.msra.mxu0 0
      %143 = vmatpush.bf16.msra.mxu0 %v130
      %144 = vmatpush.bf16.msra.mxu0 %v129
      %145 = vmatmul.bf16.gmra.mxu0 %v135
      %v146 = vpop.f32.mrf.mxu0
      %v147 = vadd.f32 %v114, %v146
      %v148 = vpop.f32.mrf.mxu0
      %v149 = vadd.f32 %v114, %v148
      %150 = vdwg.mxu0
      %v151 = vmul.f32 %v147, 0.5
      %v152 = vmul.f32 %v149, 0.5
      %v153 = vmul.f32 %v147, 0.70710677
      %v154 = vmul.f32 %v149, 0.70710677
      %v155 = vmul.f32 %v153, %v153
      %v156 = vmin.f32 16.0, %v155
      %v157 = vmul.f32 %v156, 2.1237322e-06
      %v158 = vadd.f32 %v157, 0.00028619796
      %v159 = vmul.f32 %v156, %v158
      %v160 = vadd.f32 %v159, 0.0036580483
      %v161 = vmul.f32 %v156, %v160
      %v162 = vadd.f32 %v161, 0.05243302
      %v163 = vmul.f32 %v156, %v162
      %v164 = vadd.f32 %v163, 0.18741608
      %v165 = vmul.f32 %v156, %v164
      %v166 = vadd.f32 %v165, 1.1283791
      %v167 = vmul.f32 %v153, %v166
      %v168 = vmul.f32 %v156, 3.8918573e-05
      %v169 = vadd.f32 %v168, 0.001143296
      %v170 = vmul.f32 %v156, %v169
      %v171 = vadd.f32 %v170, 0.014752088
      %v172 = vmul.f32 %v156, %v171
      %v173 = vadd.f32 %v172, 0.112945676
      %v174 = vmul.f32 %v156, %v173
      %v175 = vadd.f32 %v174, 0.4994258
      %v176 = vmul.f32 %v156, %v175
      %v177 = vadd.f32 %v176, 1.0
      %v178 = vrcp.pop %v177
      %v179 = vmul.f32 %v177, %v178
      %v180 = vsub.f32 1.0, %v179
      %v181 = vmul.f32 %v178, %v180
      %v182 = vadd.f32 %v178, %v181
      %vm183 = vweird.f32 %v177
      %vm184 = vweird.f32 %v178
      %vm185 = vmor %vm183, %vm184
      %v186 = vsel %vm185, %v178, %v182
      %v187 = vand.u32 2147483647, %v177
      %vm188 = vcmp.eq.f32.partialorder %v187, 8.507059e+37
      %v189 = vand.u32 %v177, 2147483648
      %v190 = vor.u32 1.1754944e-38, %v189
      %v191 = vsel %vm188, %v190, %v186
      %v192 = vmul.f32 %v167, %v191
      %v193 = vmin.f32 %v192, 1.0
      %v194 = vmax.f32 %v193, -1.0
      %v195 = vmul.f32 %v154, %v154
      %v196 = vmin.f32 16.0, %v195
      %v197 = vmul.f32 %v196, 2.1237322e-06
      %v198 = vadd.f32 %v197, 0.00028619796
      %v199 = vmul.f32 %v196, %v198
      %v200 = vadd.f32 %v199, 0.0036580483
      %v201 = vmul.f32 %v196, %v200
      %v202 = vadd.f32 %v201, 0.05243302
      %v203 = vmul.f32 %v196, %v202
      %v204 = vadd.f32 %v203, 0.18741608
      %v205 = vmul.f32 %v196, %v204
      %v206 = vadd.f32 %v205, 1.1283791
      %v207 = vmul.f32 %v154, %v206
      %v208 = vmul.f32 %v196, 3.8918573e-05
      %v209 = vadd.f32 %v208, 0.001143296
      %v210 = vmul.f32 %v196, %v209
      %v211 = vadd.f32 %v210, 0.014752088
      %v212 = vmul.f32 %v196, %v211
      %v213 = vadd.f32 %v212, 0.112945676
      %v214 = vmul.f32 %v196, %v213
      %v215 = vadd.f32 %v214, 0.4994258
      %v216 = vmul.f32 %v196, %v215
      %v217 = vadd.f32 %v216, 1.0
      %v218 = vrcp.pop %v217
      %v219 = vmul.f32 %v217, %v218
      %v220 = vsub.f32 1.0, %v219
      %v221 = vmul.f32 %v218, %v220
      %v222 = vadd.f32 %v218, %v221
      %vm223 = vweird.f32 %v217
      %vm224 = vweird.f32 %v218
      %vm225 = vmor %vm223, %vm224
      %v226 = vsel %vm225, %v218, %v222
      %v227 = vand.u32 2147483647, %v217
      %vm228 = vcmp.eq.f32.partialorder %v227, 8.507059e+37
      %v229 = vand.u32 %v217, 2147483648
      %v230 = vor.u32 1.1754944e-38, %v229
      %v231 = vsel %vm228, %v230, %v226
      %v232 = vmul.f32 %v207, %v231
      %v233 = vmin.f32 %v232, 1.0
      %v234 = vmax.f32 %v233, -1.0
      %v235 = vadd.f32 %v194, 1.0
      %v236 = vadd.f32 %v234, 1.0
      %v237 = vmul.f32 %v151, %v235
      %v238 = vmul.f32 %v152, %v236
      %v239 = vsel %vm133, %v237, 0.0
      %240 = vadd.xlane.f32.xlu0 %v239
      %v241 = vpop.xlane.xlu0 %240
      %v242 = vsel %vm133, %v238, 0.0
      %243 = vadd.xlane.f32.xlu0 %v242
      %v244 = vpop.xlane.xlu0 %243
      %v245 = vrcp.pop 32.0
      %v246 = vmul.f32 32.0, %v245
      %v247 = vsub.f32 1.0, %v246
      %v248 = vmul.f32 %v245, %v247
      %v249 = vadd.f32 %v245, %v248
      %vm250 = vweird.f32 %v245
      %v251 = vsel %vm250, %v245, %v249
      %v252 = vmul.f32 %v241, %v251
      %v253 = vmul.f32 %v244, %v251
      %v254 = vsub.f32 %v237, %v252
      %v255 = vsub.f32 %v238, %v253
      %v256 = vmul.f32 %v254, %v254
      %v257 = vmul.f32 %v255, %v255
      %v258 = vsel %vm133, %v256, 0.0
      %259 = vadd.xlane.f32.xlu0 %v258
      %v260 = vpop.xlane.xlu0 %259
      %v261 = vsel %vm133, %v257, 0.0
      %262 = vadd.xlane.f32.xlu0 %v261
      %v263 = vpop.xlane.xlu0 %262
      %v264 = vmul.f32 %v260, %v251
      %v265 = vmul.f32 %v263, %v251
      %v266 = vadd.f32 %v264, 1e-12
      %v267 = vadd.f32 %v265, 1e-12
      %v268 = vrsqrt.pop %v266
      %v269 = vmul.f32 %v268, %v266
      %v270 = vmul.f32 %v269, %v268
      %v271 = vmul.f32 0.5, %v270
      %v272 = vsub.f32 1.5, %v271
      %v273 = vmul.f32 %v268, %v272
      %vm274 = vweird.f32 %v266
      %vm275 = vweird.f32 %v268
      %vm276 = vmor %vm274, %vm275
      %v277 = vsel %vm276, %v268, %v273
      %v278 = vrsqrt.pop %v267
      %v279 = vmul.f32 %v278, %v267
      %v280 = vmul.f32 %v279, %v278
      %v281 = vmul.f32 0.5, %v280
      %v282 = vsub.f32 1.5, %v281
      %v283 = vmul.f32 %v278, %v282
      %vm284 = vweird.f32 %v267
      %vm285 = vweird.f32 %v278
      %vm286 = vmor %vm284, %vm285
      %v287 = vsel %vm286, %v278, %v283
      %v288 = vmul.f32 %v254, %v277
      %v289 = vmul.f32 %v255, %v287
      %v290 = vld [vmem:[#allocation8] sm:$0x1]
      %v292 = vperm.slane %v290, 0
      %v294 = vmul.f32 %v288, %v292
      %v295 = vmul.f32 %v289, %v292
      %v296 = vld [vmem:[#allocation9] sm:$0x1]
      %v298 = vperm.slane %v296, 0
      %v300 = vadd.f32 %v294, %v298
      %v301 = vadd.f32 %v295, %v298
      %v302 = vpack.c.bf16 %v300, %v300
      %v303 = vpack.c.bf16 %v301, %v301
      %vm304 = vcmask 257024
      %305 = vst.msk [vmem:[#allocation2] sm:$0xf] %vm304, %v302
      %306 = vst.msk [vmem:[#allocation2 + $0x4] sm:$0xf] %vm304, %v303
    $region53: #{tpu_custom_call.1} parent=1 // pred_fallthru
      _
    %v307 = vld [vmem:[#allocation2] sm:$0xf]
    %v308 = vld [vmem:[#allocation2 + $0x4] sm:$0xf]
    %v309 = vld [vmem:[#allocation11] sm:$0xff]
    %v310 = vld [vmem:[#allocation11 + $0x8] sm:$0xff]
    %v311 = vld [vmem:[#allocation11 + $0x10] sm:$0xff]
    %v312 = vld [vmem:[#allocation11 + $0x18] sm:$0xff]
    %v313 = vld [vmem:[%s6] sm:$0x3]
    %v315 = vperm.slane %v313, 0
    %v316 = vperm.slane %v313, 1
    %v321 = vunpack.c.l.b16 %v307
    %v322 = vunpack.c.l.b16 %v308
    %v323 = vpack.c.b16 %v322, %v321
    %v328 = vunpack.c.l.b16 %v309
    %v329 = vunpack.c.h.b16 %v309
    %v330 = vunpack.c.l.b16 %v310
    %v331 = vunpack.c.h.b16 %v310
    %v332 = vunpack.c.l.b16 %v311
    %v333 = vunpack.c.h.b16 %v311
    %v334 = vunpack.c.l.b16 %v312
    %v335 = vunpack.c.h.b16 %v312
    %v336 = vpack.c.b16 %v330, %v328
    %v337 = vpack.c.b16 %v331, %v329
    %v338 = vpack.c.b16 %v334, %v332
    %v339 = vpack.c.b16 %v335, %v333
    %vm344 = vcmask 261120
    %v346 = vsel %vm344, %v323, 0
    %348 = vmatpush.bf16.msra.mxu0 0
    %349 = vmatpush.bf16.msra.mxu0 0
    %350 = vmatpush.bf16.msra.mxu0 0
    %351 = vmatpush.bf16.msra.mxu0 0
    %352 = vmatpush.bf16.msra.mxu0 0
    %353 = vmatpush.bf16.msra.mxu0 0
    %354 = vmatpush.bf16.msra.mxu0 %v338
    %355 = vmatpush.bf16.msra.mxu0 %v336
    %356 = vmatmul.bf16.gmra.mxu0 %v346
    %v357 = vpop.f32.mrf.mxu0
    %v358 = vadd.f32 %v315, %v357
    %v359 = vpop.f32.mrf.mxu0
    %v360 = vadd.f32 %v315, %v359
    %361 = vdwg.mxu0
    %362 = vmatpush.bf16.msra.mxu0 0
    %363 = vmatpush.bf16.msra.mxu0 0
    %364 = vmatpush.bf16.msra.mxu0 0
    %365 = vmatpush.bf16.msra.mxu0 0
    %366 = vmatpush.bf16.msra.mxu0 0
    %367 = vmatpush.bf16.msra.mxu0 0
    %368 = vmatpush.bf16.msra.mxu0 %v339
    %369 = vmatpush.bf16.msra.mxu0 %v337
    %370 = vmatmul.bf16.gmra.mxu0 %v346
    %v371 = vpop.f32.mrf.mxu0
    %v372 = vadd.f32 %v316, %v371
    %v373 = vpop.f32.mrf.mxu0
    %v374 = vadd.f32 %v316, %v373
    %375 = vdwg.mxu0
    %v376 = vpack.c.bf16 %v372, %v358
    %v377 = vpack.c.bf16 %v374, %v360
    %378 = vst [vmem:[#allocation12] sm:$0xff] %v376
    %379 = vst [vmem:[#allocation12 + $0x8] sm:$0xff] %v377
    // Predicated region
    $region54: #{tpu_custom_call.1} parent=1 // pred_check
      _
    $region55: #{tpu_custom_call.1} parent=1 // pred_check_branch
      %381 = sbr.rel (0) target = $region57
    $region56: #{tpu_custom_call.1} parent=1 // pred_region
      %383 = vsyncadd [#allocation5], 0
      %s384 = sshll.u32 [#allocation12], 4
      %s385 = int_to_ptr.vmem [resolvable:$true] %s384
      %s386 = sshll.u32 %s7, 4
      %s387 = int_to_ptr.hbm [resolvable:$true] %s386
      %392 = dma.vmem_to_hbm [thread:$0]  %s385, 256, %s387, [#allocation5], 128, 128, 8
    $region57: #{tpu_custom_call.1} parent=1 // pred_fallthru
      _
    // Predicated region
    $region58: #{tpu_custom_call.1} parent=1 // pred_check
      _
    $region59: #{tpu_custom_call.1} parent=1 // pred_check_branch
      %394 = sbr.rel (0) target = $region61
    $region60: #{tpu_custom_call.1} parent=1 // pred_region
      %396 = dma.done [#allocation5], 256
    $region61: #{tpu_custom_call.1} parent=1 // pred_fallthru
      _
    %397 = vsyncpa [#allocation4], 1
    %398 = vsyncpa [#allocation7], 1
    %399 = vsyncpa [#allocation10], 1
    %400 = vsyncpa [#allocation5], 1

</llo_original>
